<compile_context>
chip_gen: v7x
topology: tpu7x:2x2x1
jax: 0.10.0
libtpu: 0.0.40
codegen_flags: <defaults>
</compile_context>

<pallas_src>
import functools

import jax
import jax.numpy as jnp
from jax.experimental import pallas as pl
from jax.experimental.pallas import tpu as pltpu

BN_EPS = 1e-5
LEAKY_SLOPE = 0.01  # nn.LeakyReLU default negative_slope


def _fused_jigsaw_kernel(x_ref, w1_ref, g1_ref, b1_ref, w2_ref, g2_ref, b2_ref,
                         o_ref, h1_sc, *, batch_tile, jig, out_rows):
    i = pl.program_id(0)

    # ---- Stage 1 (per batch tile): adaptive avg-pool + fc1 on the MXU ----------
    x = x_ref[...].astype(jnp.float32)             # (TB, C, HW), up-cast in vregs
    pooled = jnp.mean(x, axis=-1)                  # (TB, C) == AdaptiveAvgPool2d((1,1)).squeeze
    h = jnp.dot(pooled.astype(jnp.bfloat16),
                w1_ref[...].astype(jnp.bfloat16),
                preferred_element_type=jnp.float32)   # (TB, E), f32 accumulate
    row0 = pl.multiple_of(i * batch_tile, batch_tile)
    h1_sc[pl.ds(row0, batch_tile), :] = h          # pre-BN fc1 activations stay in VMEM

    # ---- Finalize once, on the last grid step (BN needs full-batch statistics) --
    @pl.when(i == pl.num_programs(0) - 1)
    def _():
        h1 = h1_sc[...]                            # (B, E)
        mu1 = jnp.mean(h1, axis=0, keepdims=True)
        var1 = jnp.mean((h1 - mu1) ** 2, axis=0, keepdims=True)  # biased (training mode)
        s1 = g1_ref[...] * jax.lax.rsqrt(var1 + BN_EPS)          # fused BN scale
        t1 = b1_ref[...] - mu1 * s1                              # fused BN shift

        enc = h1.shape[1]
        # x.view(-1, J*E) @ W2  ==  sum_j  a1[j::J, :] @ W2[j*E:(j+1)*E, :]
        acc = jnp.zeros((out_rows, enc), jnp.float32)
        for j in range(jig):                       # static unroll, jig is small
            hj = h1_sc[pl.ds(j, out_rows, stride=jig), :]        # strided VMEM read
            aj = hj * s1 + t1
            aj = jnp.where(aj >= 0.0, aj, LEAKY_SLOPE * aj)      # LeakyReLU
            wj = w2_ref[pl.ds(j * enc, enc), :]
            acc = acc + jnp.dot(aj.astype(jnp.bfloat16),
                                wj.astype(jnp.bfloat16),
                                preferred_element_type=jnp.float32)

        mu2 = jnp.mean(acc, axis=0, keepdims=True)
        var2 = jnp.mean((acc - mu2) ** 2, axis=0, keepdims=True)
        s2 = g2_ref[...] * jax.lax.rsqrt(var2 + BN_EPS)
        t2 = b2_ref[...] - mu2 * s2
        a2 = acc * s2 + t2
        o_ref[...] = jnp.where(a2 >= 0.0, a2, LEAKY_SLOPE * a2)


def _jigsaw_pieces(jigsaw_size):
    if isinstance(jigsaw_size, int):
        return jigsaw_size ** 2
    assert len(jigsaw_size) == 2
    return jigsaw_size[0] * jigsaw_size[1]


def _choose_batch_tile(batch, row_bytes, budget_bytes):
    """Largest divisor of `batch` whose double-buffered x tile fits the VMEM
    budget, preferring sublane-aligned (multiple of 8) tiles."""
    cap = max(1, budget_bytes // (2 * row_bytes))
    divisors = [d for d in range(1, batch + 1) if batch % d == 0 and d <= cap]
    if not divisors:
        return 1
    aligned = [d for d in divisors if d % 8 == 0]
    return max(aligned) if aligned else max(divisors)


def jigsaw_task_forward(x, params, jigsaw_size, *, batch_tile=None,
                        x_vmem_budget_bytes=8 * 1024 * 1024):
    """Fused JigsawTask forward. x: (B, C, H, W) NCHW, like the PyTorch module."""
    jig = _jigsaw_pieces(jigsaw_size)
    B, C, H, W = x.shape
    E = params["w1"].shape[1]
    assert B % jig == 0, f"batch {B} must be a multiple of jigsaw pieces {jig}"
    out_rows = B // jig
    hw = H * W

    # Free (no-copy) flatten of the spatial dims; the dtype cast happens in-kernel.
    x3 = x.reshape(B, C, hw)

    if batch_tile is None:
        # Conservative default: double-buffered x tile <= ~8 MiB keeps us inside
        # the default scoped-VMEM limit on v5e (16 MiB) and well within v7x's
        # 64 MiB physical / 32 MiB scoped VMEM. Re-derive the tile (don't just
        # bump vmem_limit_bytes) when C*H*W grows.
        batch_tile = _choose_batch_tile(B, C * hw * x3.dtype.itemsize,
                                        x_vmem_budget_bytes)
    assert B % batch_tile == 0
    nb = B // batch_tile

    kernel = functools.partial(_fused_jigsaw_kernel, batch_tile=batch_tile,
                               jig=jig, out_rows=out_rows)

    return pl.pallas_call(
        kernel,
        out_shape=jax.ShapeDtypeStruct((out_rows, E), jnp.float32),
        grid=(nb,),
        in_specs=[
            # Only x is tiled (the only large operand); Pallas double-buffers the
            # HBM->VMEM DMA of each (TB, C, HW) tile against pool+fc1 compute.
            pl.BlockSpec((batch_tile, C, hw), lambda i: (i, 0, 0)),
            pl.BlockSpec((C, E), lambda i: (0, 0)),          # w1 (tiny, resident)
            pl.BlockSpec((1, E), lambda i: (0, 0)),          # gamma1
            pl.BlockSpec((1, E), lambda i: (0, 0)),          # beta1
            pl.BlockSpec((jig * E, E), lambda i: (0, 0)),    # w2
            pl.BlockSpec((1, E), lambda i: (0, 0)),          # gamma2
            pl.BlockSpec((1, E), lambda i: (0, 0)),          # beta2
        ],
        # Same output block every step; written only on the last grid step.
        out_specs=pl.BlockSpec((out_rows, E), lambda i: (0, 0)),
        scratch_shapes=[pltpu.VMEM((B, E), jnp.float32)],    # h1 stays on-chip
        # The batch grid axis carries the BN dependency (scratch fill + last-step
        # finalize), so it must be "arbitrary", not "parallel".
        compiler_params=pltpu.CompilerParams(dimension_semantics=("arbitrary",)),
    )(x3, params["w1"], params["gamma1"], params["beta1"],
      params["w2"], params["gamma2"], params["beta2"])


def _reference(x, params, jigsaw_size):
    """Pure-JAX replica of the PyTorch forward (training-mode BN), mirroring the
    kernel's bf16 MXU operand precision so the comparison is apples-to-apples."""
    jig = _jigsaw_pieces(jigsaw_size)
    B, C, H, W = x.shape
    E = params["w1"].shape[1]

    def bn_lrelu(h, gamma, beta):
        mu = jnp.mean(h, axis=0, keepdims=True)
        var = jnp.mean((h - mu) ** 2, axis=0, keepdims=True)
        s = gamma * jax.lax.rsqrt(var + BN_EPS)
        t = beta - mu * s
        y = h * s + t
        return jnp.where(y >= 0.0, y, LEAKY_SLOPE * y)

    pooled = jnp.mean(x.astype(jnp.float32).reshape(B, C, H * W), axis=-1)
    h = jnp.dot(pooled.astype(jnp.bfloat16), params["w1"].astype(jnp.bfloat16),
                preferred_element_type=jnp.float32)
    a = bn_lrelu(h, params["gamma1"], params["beta1"])
    a = a.reshape(-1, jig * E)
    h2 = jnp.dot(a.astype(jnp.bfloat16), params["w2"].astype(jnp.bfloat16),
                 preferred_element_type=jnp.float32)
    return bn_lrelu(h2, params["gamma2"], params["beta2"])


if __name__ == "__main__":
    # Small shapes consistent with the module:
    #   input_size (C) = 32, encoding_size (E) = 32, jigsaw_size = 2 -> J = 4
    #   batch B = 16 (multiple of J), spatial 8x8.
    jigsaw_size = 2
    J = jigsaw_size ** 2
    B, C, H, W = 16, 32, 8, 8
    E = 32

    key = jax.random.PRNGKey(0)
    kx, kw1, kw2 = jax.random.split(key, 3)

    x = jax.random.normal(kx, (B, C, H, W), jnp.float32)
    params = {
        # fc1.weight is (E, C) in PyTorch; stored pre-transposed as (C, E).
        "w1": 0.1 * jax.random.normal(kw1, (C, E), jnp.float32),
        "gamma1": jnp.ones((1, E), jnp.float32),   # BatchNorm1d default affine init
        "beta1": jnp.zeros((1, E), jnp.float32),
        # fc2.weight is (E, J*E) in PyTorch; stored pre-transposed as (J*E, E).
        "w2": 0.05 * jax.random.normal(kw2, (J * E, E), jnp.float32),
        "gamma2": jnp.ones((1, E), jnp.float32),
        "beta2": jnp.zeros((1, E), jnp.float32),
    }

    # batch_tile=8 -> a 2-step grid, exercising the pipelined stage-1 sweep and the
    # last-step BN/regroup/fc2 finalization.
    out = jigsaw_task_forward(x, params, jigsaw_size, batch_tile=8)
    out = jax.block_until_ready(out)
    assert out.shape == (B // J, E), out.shape

    ref = _reference(x, params, jigsaw_size)
    max_err = float(jnp.max(jnp.abs(out - ref)))
    assert jnp.allclose(out, ref, atol=1e-2, rtol=1e-2), max_err

    print("KERNEL_OK")
</pallas_src>

<mosaic_0001>
module attributes {stable_mosaic.version = 11 : i64} {
  func.func @_fused_jigsaw_kernel(%arg0: i32, %arg1: memref<8x32x64xf32, #tpu.memory_space<vmem>>, %arg2: memref<32x32xf32, #tpu.memory_space<vmem>>, %arg3: memref<1x32xf32, #tpu.memory_space<vmem>>, %arg4: memref<1x32xf32, #tpu.memory_space<vmem>>, %arg5: memref<128x32xf32, #tpu.memory_space<vmem>>, %arg6: memref<1x32xf32, #tpu.memory_space<vmem>>, %arg7: memref<1x32xf32, #tpu.memory_space<vmem>>, %arg8: memref<4x32xf32, #tpu.memory_space<vmem>>, %arg9: memref<16x32xf32, #tpu.memory_space<vmem>>) attributes {dimension_semantics = [#tpu.dimension_semantics<arbitrary>], iteration_bounds = array<i64: 2>, scalar_prefetch = 0 : i64, scratch_operands = 1 : i64, tpu.core_type = #tpu.core_type<tc>, window_params = [{transform_indices = @transform_0, window_bounds = array<i64: 8, 32, 64>}, {pipeline_mode = #tpu.pipeline_mode<synchronous>, transform_indices = @transform_1, window_bounds = array<i64: 32, 32>}, {pipeline_mode = #tpu.pipeline_mode<synchronous>, transform_indices = @transform_2, window_bounds = array<i64: 1, 32>}, {pipeline_mode = #tpu.pipeline_mode<synchronous>, transform_indices = @transform_3, window_bounds = array<i64: 1, 32>}, {pipeline_mode = #tpu.pipeline_mode<synchronous>, transform_indices = @transform_4, window_bounds = array<i64: 128, 32>}, {pipeline_mode = #tpu.pipeline_mode<synchronous>, transform_indices = @transform_5, window_bounds = array<i64: 1, 32>}, {pipeline_mode = #tpu.pipeline_mode<synchronous>, transform_indices = @transform_6, window_bounds = array<i64: 1, 32>}, {pipeline_mode = #tpu.pipeline_mode<synchronous>, transform_indices = @transform_7, window_bounds = array<i64: 4, 32>}]} {
    %c0 = arith.constant 0 : index
    %c0_0 = arith.constant 0 : index
    %c0_1 = arith.constant 0 : index
    %0 = vector.load %arg1[%c0, %c0_0, %c0_1] : memref<8x32x64xf32, #tpu.memory_space<vmem>>, vector<8x32x64xf32>
    %cst = arith.constant dense<0.000000e+00> : vector<8x32xf32>
    %1 = vector.multi_reduction <add>, %0, %cst [2] : vector<8x32x64xf32> to vector<8x32xf32>
    %cst_2 = arith.constant 6.400000e+01 : f32
    %2 = vector.broadcast %cst_2 : f32 to vector<8x32xf32>
    %3 = arith.divf %1, %2 : vector<8x32xf32>
    %4 = arith.truncf %3 : vector<8x32xf32> to vector<8x32xbf16>
    %c0_3 = arith.constant 0 : index
    %c0_4 = arith.constant 0 : index
    %5 = vector.load %arg2[%c0_3, %c0_4] : memref<32x32xf32, #tpu.memory_space<vmem>>, vector<32x32xf32>
    %6 = arith.truncf %5 : vector<32x32xf32> to vector<32x32xbf16>
    %cst_5 = arith.constant dense<0.000000e+00> : vector<8x32xf32>
    %7 = tpu.matmul %4, %6, %cst_5 {dimension_numbers = #tpu.dot_dimension_numbers<[1], [0], [0], [1], [0, 0, 1, 1], [], []>} : vector<8x32xbf16>, vector<32x32xbf16>, vector<8x32xf32> -> vector<8x32xf32>
    %c8_i32 = arith.constant 8 : i32
    %8 = arith.muli %arg0, %c8_i32 : i32
    %9 = tpu.assume_multiple %8, 8 : i32
    %10 = arith.index_cast %9 : i32 to index
    %c0_6 = arith.constant 0 : index
    %11 = vector.load %arg9[%10, %c0_6] : memref<16x32xf32, #tpu.memory_space<vmem>>, vector<8x32xf32>
    tpu.vector_store %arg9[%10, %c0_6], %7 {strides = array<i32>} : memref<16x32xf32, #tpu.memory_space<vmem>>, vector<8x32xf32>,
    %c1_i32 = arith.constant 1 : i32
    %12 = arith.cmpi eq, %arg0, %c1_i32 : i32
    %13 = arith.extui %12 : i1 to i32
    %c0_i32 = arith.constant 0 : i32
    %14 = arith.cmpi ne, %13, %c0_i32 : i32
    scf.if %14 {
      %c0_7 = arith.constant 0 : index
      %c0_8 = arith.constant 0 : index
      %15 = vector.load %arg9[%c0_7, %c0_8] : memref<16x32xf32, #tpu.memory_space<vmem>>, vector<16x32xf32>
      %cst_9 = arith.constant dense<0.000000e+00> : vector<32xf32>
      %16 = vector.multi_reduction <add>, %15, %cst_9 [0] : vector<16x32xf32> to vector<32xf32>
      %17 = vector.shape_cast %16 : vector<32xf32> to vector<1x32xf32>
      %cst_10 = arith.constant 1.600000e+01 : f32
      %18 = vector.broadcast %cst_10 : f32 to vector<1x32xf32>
      %19 = arith.divf %17, %18 : vector<1x32xf32>
      %20 = vector.broadcast %19 : vector<1x32xf32> to vector<16x32xf32>
      %21 = arith.subf %15, %20 : vector<16x32xf32>
      %22 = arith.mulf %21, %21 : vector<16x32xf32>
      %cst_11 = arith.constant dense<0.000000e+00> : vector<32xf32>
      %23 = vector.multi_reduction <add>, %22, %cst_11 [0] : vector<16x32xf32> to vector<32xf32>
      %24 = vector.shape_cast %23 : vector<32xf32> to vector<1x32xf32>
      %cst_12 = arith.constant 1.600000e+01 : f32
      %25 = vector.broadcast %cst_12 : f32 to vector<1x32xf32>
      %26 = arith.divf %24, %25 : vector<1x32xf32>
      %c0_13 = arith.constant 0 : index
      %c0_14 = arith.constant 0 : index
      %27 = vector.load %arg3[%c0_13, %c0_14] : memref<1x32xf32, #tpu.memory_space<vmem>>, vector<1x32xf32>
      %cst_15 = arith.constant 9.99999974E-6 : f32
      %28 = vector.broadcast %cst_15 : f32 to vector<1x32xf32>
      %29 = arith.addf %26, %28 : vector<1x32xf32>
      %30 = math.rsqrt %29 : vector<1x32xf32>
      %31 = arith.mulf %27, %30 : vector<1x32xf32>
      %c0_16 = arith.constant 0 : index
      %c0_17 = arith.constant 0 : index
      %32 = vector.load %arg4[%c0_16, %c0_17] : memref<1x32xf32, #tpu.memory_space<vmem>>, vector<1x32xf32>
      %33 = arith.mulf %19, %31 : vector<1x32xf32>
      %34 = arith.subf %32, %33 : vector<1x32xf32>
      %cst_18 = arith.constant 0.000000e+00 : f32
      %35 = vector.broadcast %cst_18 : f32 to vector<4x32xf32>
      %c0_19 = arith.constant 0 : index
      %c0_20 = arith.constant 0 : index
      %36 = tpu.strided_load %arg9[%c0_19, %c0_20] {strides = array<i32: 4, 1>} : memref<16x32xf32, #tpu.memory_space<vmem>>, vector<4x32xf32>
      %37 = vector.broadcast %31 : vector<1x32xf32> to vector<4x32xf32>
      %38 = arith.mulf %36, %37 : vector<4x32xf32>
      %39 = vector.broadcast %34 : vector<1x32xf32> to vector<4x32xf32>
      %40 = arith.addf %38, %39 : vector<4x32xf32>
      %cst_21 = arith.constant 0.000000e+00 : f32
      %41 = vector.broadcast %cst_21 : f32 to vector<4x32xf32>
      %42 = arith.cmpf oge, %40, %41 : vector<4x32xf32>
      %cst_22 = arith.constant 0.00999999977 : f32
      %43 = vector.broadcast %cst_22 : f32 to vector<4x32xf32>
      %44 = arith.mulf %43, %40 : vector<4x32xf32>
      %45 = arith.select %42, %40, %44 : vector<4x32xi1>, vector<4x32xf32>
      %c0_23 = arith.constant 0 : index
      %c0_24 = arith.constant 0 : index
      %46 = vector.load %arg5[%c0_23, %c0_24] : memref<128x32xf32, #tpu.memory_space<vmem>>, vector<32x32xf32>
      %47 = arith.truncf %45 : vector<4x32xf32> to vector<4x32xbf16>
      %48 = arith.truncf %46 : vector<32x32xf32> to vector<32x32xbf16>
      %cst_25 = arith.constant dense<0.000000e+00> : vector<4x32xf32>
      %49 = tpu.matmul %47, %48, %cst_25 {dimension_numbers = #tpu.dot_dimension_numbers<[1], [0], [0], [1], [0, 0, 1, 1], [], []>} : vector<4x32xbf16>, vector<32x32xbf16>, vector<4x32xf32> -> vector<4x32xf32>
      %50 = arith.addf %35, %49 : vector<4x32xf32>
      %c1 = arith.constant 1 : index
      %c0_26 = arith.constant 0 : index
      %51 = tpu.strided_load %arg9[%c1, %c0_26] {strides = array<i32: 4, 1>} : memref<16x32xf32, #tpu.memory_space<vmem>>, vector<4x32xf32>
      %52 = vector.broadcast %31 : vector<1x32xf32> to vector<4x32xf32>
      %53 = arith.mulf %51, %52 : vector<4x32xf32>
      %54 = vector.broadcast %34 : vector<1x32xf32> to vector<4x32xf32>
      %55 = arith.addf %53, %54 : vector<4x32xf32>
      %cst_27 = arith.constant 0.000000e+00 : f32
      %56 = vector.broadcast %cst_27 : f32 to vector<4x32xf32>
      %57 = arith.cmpf oge, %55, %56 : vector<4x32xf32>
      %cst_28 = arith.constant 0.00999999977 : f32
      %58 = vector.broadcast %cst_28 : f32 to vector<4x32xf32>
      %59 = arith.mulf %58, %55 : vector<4x32xf32>
      %60 = arith.select %57, %55, %59 : vector<4x32xi1>, vector<4x32xf32>
      %c32 = arith.constant 32 : index
      %c0_29 = arith.constant 0 : index
      %61 = vector.load %arg5[%c32, %c0_29] : memref<128x32xf32, #tpu.memory_space<vmem>>, vector<32x32xf32>
      %62 = arith.truncf %60 : vector<4x32xf32> to vector<4x32xbf16>
      %63 = arith.truncf %61 : vector<32x32xf32> to vector<32x32xbf16>
      %cst_30 = arith.constant dense<0.000000e+00> : vector<4x32xf32>
      %64 = tpu.matmul %62, %63, %cst_30 {dimension_numbers = #tpu.dot_dimension_numbers<[1], [0], [0], [1], [0, 0, 1, 1], [], []>} : vector<4x32xbf16>, vector<32x32xbf16>, vector<4x32xf32> -> vector<4x32xf32>
      %65 = arith.addf %50, %64 : vector<4x32xf32>
      %c2 = arith.constant 2 : index
      %c0_31 = arith.constant 0 : index
      %66 = tpu.strided_load %arg9[%c2, %c0_31] {strides = array<i32: 4, 1>} : memref<16x32xf32, #tpu.memory_space<vmem>>, vector<4x32xf32>
      %67 = vector.broadcast %31 : vector<1x32xf32> to vector<4x32xf32>
      %68 = arith.mulf %66, %67 : vector<4x32xf32>
      %69 = vector.broadcast %34 : vector<1x32xf32> to vector<4x32xf32>
      %70 = arith.addf %68, %69 : vector<4x32xf32>
      %cst_32 = arith.constant 0.000000e+00 : f32
      %71 = vector.broadcast %cst_32 : f32 to vector<4x32xf32>
      %72 = arith.cmpf oge, %70, %71 : vector<4x32xf32>
      %cst_33 = arith.constant 0.00999999977 : f32
      %73 = vector.broadcast %cst_33 : f32 to vector<4x32xf32>
      %74 = arith.mulf %73, %70 : vector<4x32xf32>
      %75 = arith.select %72, %70, %74 : vector<4x32xi1>, vector<4x32xf32>
      %c64 = arith.constant 64 : index
      %c0_34 = arith.constant 0 : index
      %76 = vector.load %arg5[%c64, %c0_34] : memref<128x32xf32, #tpu.memory_space<vmem>>, vector<32x32xf32>
      %77 = arith.truncf %75 : vector<4x32xf32> to vector<4x32xbf16>
      %78 = arith.truncf %76 : vector<32x32xf32> to vector<32x32xbf16>
      %cst_35 = arith.constant dense<0.000000e+00> : vector<4x32xf32>
      %79 = tpu.matmul %77, %78, %cst_35 {dimension_numbers = #tpu.dot_dimension_numbers<[1], [0], [0], [1], [0, 0, 1, 1], [], []>} : vector<4x32xbf16>, vector<32x32xbf16>, vector<4x32xf32> -> vector<4x32xf32>
      %80 = arith.addf %65, %79 : vector<4x32xf32>
      %c3 = arith.constant 3 : index
      %c0_36 = arith.constant 0 : index
      %81 = tpu.strided_load %arg9[%c3, %c0_36] {strides = array<i32: 4, 1>} : memref<16x32xf32, #tpu.memory_space<vmem>>, vector<4x32xf32>
      %82 = vector.broadcast %31 : vector<1x32xf32> to vector<4x32xf32>
      %83 = arith.mulf %81, %82 : vector<4x32xf32>
      %84 = vector.broadcast %34 : vector<1x32xf32> to vector<4x32xf32>
      %85 = arith.addf %83, %84 : vector<4x32xf32>
      %cst_37 = arith.constant 0.000000e+00 : f32
      %86 = vector.broadcast %cst_37 : f32 to vector<4x32xf32>
      %87 = arith.cmpf oge, %85, %86 : vector<4x32xf32>
      %cst_38 = arith.constant 0.00999999977 : f32
      %88 = vector.broadcast %cst_38 : f32 to vector<4x32xf32>
      %89 = arith.mulf %88, %85 : vector<4x32xf32>
      %90 = arith.select %87, %85, %89 : vector<4x32xi1>, vector<4x32xf32>
      %c96 = arith.constant 96 : index
      %c0_39 = arith.constant 0 : index
      %91 = vector.load %arg5[%c96, %c0_39] : memref<128x32xf32, #tpu.memory_space<vmem>>, vector<32x32xf32>
      %92 = arith.truncf %90 : vector<4x32xf32> to vector<4x32xbf16>
      %93 = arith.truncf %91 : vector<32x32xf32> to vector<32x32xbf16>
      %cst_40 = arith.constant dense<0.000000e+00> : vector<4x32xf32>
      %94 = tpu.matmul %92, %93, %cst_40 {dimension_numbers = #tpu.dot_dimension_numbers<[1], [0], [0], [1], [0, 0, 1, 1], [], []>} : vector<4x32xbf16>, vector<32x32xbf16>, vector<4x32xf32> -> vector<4x32xf32>
      %95 = arith.addf %80, %94 : vector<4x32xf32>
      %cst_41 = arith.constant dense<0.000000e+00> : vector<32xf32>
      %96 = vector.multi_reduction <add>, %95, %cst_41 [0] : vector<4x32xf32> to vector<32xf32>
      %97 = vector.shape_cast %96 : vector<32xf32> to vector<1x32xf32>
      %cst_42 = arith.constant 4.000000e+00 : f32
      %98 = vector.broadcast %cst_42 : f32 to vector<1x32xf32>
      %99 = arith.divf %97, %98 : vector<1x32xf32>
      %100 = vector.broadcast %99 : vector<1x32xf32> to vector<4x32xf32>
      %101 = arith.subf %95, %100 : vector<4x32xf32>
      %102 = arith.mulf %101, %101 : vector<4x32xf32>
      %cst_43 = arith.constant dense<0.000000e+00> : vector<32xf32>
      %103 = vector.multi_reduction <add>, %102, %cst_43 [0] : vector<4x32xf32> to vector<32xf32>
      %104 = vector.shape_cast %103 : vector<32xf32> to vector<1x32xf32>
      %cst_44 = arith.constant 4.000000e+00 : f32
      %105 = vector.broadcast %cst_44 : f32 to vector<1x32xf32>
      %106 = arith.divf %104, %105 : vector<1x32xf32>
      %c0_45 = arith.constant 0 : index
      %c0_46 = arith.constant 0 : index
      %107 = vector.load %arg6[%c0_45, %c0_46] : memref<1x32xf32, #tpu.memory_space<vmem>>, vector<1x32xf32>
      %cst_47 = arith.constant 9.99999974E-6 : f32
      %108 = vector.broadcast %cst_47 : f32 to vector<1x32xf32>
      %109 = arith.addf %106, %108 : vector<1x32xf32>
      %110 = math.rsqrt %109 : vector<1x32xf32>
      %111 = arith.mulf %107, %110 : vector<1x32xf32>
      %c0_48 = arith.constant 0 : index
      %c0_49 = arith.constant 0 : index
      %112 = vector.load %arg7[%c0_48, %c0_49] : memref<1x32xf32, #tpu.memory_space<vmem>>, vector<1x32xf32>
      %113 = arith.mulf %99, %111 : vector<1x32xf32>
      %114 = arith.subf %112, %113 : vector<1x32xf32>
      %115 = vector.broadcast %111 : vector<1x32xf32> to vector<4x32xf32>
      %116 = arith.mulf %95, %115 : vector<4x32xf32>
      %117 = vector.broadcast %114 : vector<1x32xf32> to vector<4x32xf32>
      %118 = arith.addf %116, %117 : vector<4x32xf32>
      %cst_50 = arith.constant 0.000000e+00 : f32
      %119 = vector.broadcast %cst_50 : f32 to vector<4x32xf32>
      %120 = arith.cmpf oge, %118, %119 : vector<4x32xf32>
      %cst_51 = arith.constant 0.00999999977 : f32
      %121 = vector.broadcast %cst_51 : f32 to vector<4x32xf32>
      %122 = arith.mulf %121, %118 : vector<4x32xf32>
      %123 = arith.select %120, %118, %122 : vector<4x32xi1>, vector<4x32xf32>
      %c0_52 = arith.constant 0 : index
      %c0_53 = arith.constant 0 : index
      %124 = vector.load %arg8[%c0_52, %c0_53] : memref<4x32xf32, #tpu.memory_space<vmem>>, vector<4x32xf32>
      tpu.vector_store %arg8[%c0_52, %c0_53], %123 {strides = array<i32>} : memref<4x32xf32, #tpu.memory_space<vmem>>, vector<4x32xf32>,
    } else {
    }
    return
  }
  func.func @transform_0(%arg0: i32) -> (i32, i32, i32) {
    %c0_i32 = arith.constant 0 : i32
    %c0_i32_0 = arith.constant 0 : i32
    %c0_i32_1 = arith.constant 0 : i32
    return %arg0, %c0_i32, %c0_i32_0 : i32, i32, i32
  }
  func.func @transform_1(%arg0: i32) -> (i32, i32) {
    %c0_i32 = arith.constant 0 : i32
    %c0_i32_0 = arith.constant 0 : i32
    %c0_i32_1 = arith.constant 0 : i32
    return %c0_i32, %c0_i32_0 : i32, i32
  }
  func.func @transform_2(%arg0: i32) -> (i32, i32) {
    %c0_i32 = arith.constant 0 : i32
    %c0_i32_0 = arith.constant 0 : i32
    %c0_i32_1 = arith.constant 0 : i32
    return %c0_i32, %c0_i32_0 : i32, i32
  }
  func.func @transform_3(%arg0: i32) -> (i32, i32) {
    %c0_i32 = arith.constant 0 : i32
    %c0_i32_0 = arith.constant 0 : i32
    %c0_i32_1 = arith.constant 0 : i32
    return %c0_i32, %c0_i32_0 : i32, i32
  }
  func.func @transform_4(%arg0: i32) -> (i32, i32) {
    %c0_i32 = arith.constant 0 : i32
    %c0_i32_0 = arith.constant 0 : i32
    %c0_i32_1 = arith.constant 0 : i32
    return %c0_i32, %c0_i32_0 : i32, i32
  }
  func.func @transform_5(%arg0: i32) -> (i32, i32) {
    %c0_i32 = arith.constant 0 : i32
    %c0_i32_0 = arith.constant 0 : i32
    %c0_i32_1 = arith.constant 0 : i32
    return %c0_i32, %c0_i32_0 : i32, i32
  }
  func.func @transform_6(%arg0: i32) -> (i32, i32) {
    %c0_i32 = arith.constant 0 : i32
    %c0_i32_0 = arith.constant 0 : i32
    %c0_i32_1 = arith.constant 0 : i32
    return %c0_i32, %c0_i32_0 : i32, i32
  }
  func.func @transform_7(%arg0: i32) -> (i32, i32) {
    %c0_i32 = arith.constant 0 : i32
    %c0_i32_0 = arith.constant 0 : i32
    %c0_i32_1 = arith.constant 0 : i32
    return %c0_i32, %c0_i32_0 : i32, i32
  }
}

</mosaic_0001>

<llo_original>
// kernel: tpu_custom_call.1
$region0: #{tpu_custom_call.1}
  #allocation0 [shape = 'u32[]', space=smem, size = 0x4, offset = 0x4, fixed_abs, tag = 'smem constant byte address 0x4 - core index']
  #allocation1 [shape = 'u32[144,128]{1,0:T(1,128)}', space=vmem, size = 0x12000, scoped, tag = 'internal scratch']
  #allocation2 [shape = 'f32[16,32]{1,0:T(8,128)}', space=vmem, size = 0x2000, scoped, tag = 'scratch operand']
  %s0 = inlined_call_operand.hbm [shape: f32[16,32,64], index: 0, kind: input, shape index: {}]
  %s1 = inlined_call_operand.vmem [shape: f32[32,32], index: 1, kind: input, shape index: {}]
  %s2 = inlined_call_operand.vmem [shape: f32[1,32], index: 2, kind: input, shape index: {}]
  %s3 = inlined_call_operand.vmem [shape: f32[1,32], index: 3, kind: input, shape index: {}]
  %s4 = inlined_call_operand.vmem [shape: f32[128,32], index: 4, kind: input, shape index: {}]
  %s5 = inlined_call_operand.vmem [shape: f32[1,32], index: 5, kind: input, shape index: {}]
  %s6 = inlined_call_operand.vmem [shape: f32[1,32], index: 6, kind: input, shape index: {}]
  %s7 = inlined_call_operand.hbm [shape: f32[4,32], index: 7, kind: output, shape index: {}]
  %s8 = sld [smem:[#allocation0]]
  $region69: #{tpu_custom_call.1} parent=0
    _
  %s10 = ssub.s32 1, %s8
  %s11 = scalar_select 0, %s10, %s8
  $region1: #{tpu_custom_call.1} parent=0
    #allocation3 [shape = 'u8[262144]{0}', space=vmem, size = 0x40000, scoped, tag = 'input window, operand 0']
    #allocation4 [shape = 's32[2]{0}', space=sflag, size = 0x8, scoped, tag = 'scoped memory for tpu_custom_call.1']
    #allocation5 [shape = 's32[2]{0}', space=sflag, size = 0x8, scoped, tag = 'scoped memory for tpu_custom_call.1']
    #allocation6 [shape = 'u8[2048]{0}', space=vmem, size = 0x800, scoped, tag = 'output window, operand 0, single buffered']
    %12 = vsyncpa [#allocation4], 0
    %s13 = scalar_lea.sflag [#allocation4], 1
    %14 = vsyncpa %s13, 0
    %15 = vsyncpa [#allocation5], 0
    loop: start=0, step=1, limit=4
    $region2: #{tpu_custom_call.1} parent=1 // loop_pre_header
      _
    $region3: #{tpu_custom_call.1} parent=1 // loop_header
      %s17 = sphi 0, %s21
      %p18 = scmp.ge.s32.totalorder %s17, 4
      %s27 = sphi 0, %s29
      %s30 = sphi 0, %s27
      %s31 = sphi 0, %s30
      %s47 = sphi 0, %s31
      %s51 = sphi 0, %s51
      %s53 = sphi 0, %s51
      %s54 = sphi 0, %s53
      %s68 = sphi 0, %s54
      %s72 = sphi 0, %s72
      %s74 = sphi 0, %s72
      %s75 = sphi 0, %s74
      %s89 = sphi 0, %s75
      %s93 = sphi 0, %s93
      %s95 = sphi 0, %s93
      %s96 = sphi 0, %s95
      %s110 = sphi 0, %s96
      %s114 = sphi 0, %s114
      %s116 = sphi 0, %s114
      %s117 = sphi 0, %s116
      %s131 = sphi 0, %s117
      %s135 = sphi 0, %s135
      %s137 = sphi 0, %s135
      %s138 = sphi 0, %s137
      %s152 = sphi 0, %s138
      %s156 = sphi 0, %s156
      %s158 = sphi 0, %s156
      %s159 = sphi 0, %s158
      %s173 = sphi 0, %s159
      %s177 = sphi 0, %s177
      %s179 = sphi 0, %s177
      %s180 = sphi 0, %s179
      %s194 = sphi 0, %s180
    $region4: #{tpu_custom_call.1} parent=1 // loop_header_branch
      %20 = sbr.rel (%p18) target = $region8
    $region5: #{tpu_custom_call.1} parent=1 // loop_body
      %s22 = ssub.s32 %s17, 1
      %s23 = ssub.s32 %s17, 2
      %s24 = sadd.s32 %s17, 1
      %s25 = ssub.s32 %s17, %s24
      %p26 = scmp.eq.s32.totalorder %s25, 0
      %s28 = sadd.s32 %s27, 1
      %s29 = scalar_select %p26, %s27, %s28
      %p32 = pneg %p26
      %p33 = scmp.eq.s32.totalorder %s17, 1
      %p34 = por %p32, %p33
      %p35 = scmp.ne.s32.totalorder %s27, %s30
      %p36 = scmp.eq.s32.totalorder %s17, 0
      %p37 = por %p35, %p36
      %p38 = scmp.ne.s32.totalorder %s27, %s30
      %p39 = scmp.eq.s32.totalorder %s22, 1
      %p40 = por %p38, %p39
      %p41 = scmp.ne.s32.totalorder %s30, %s31
      %p42 = scmp.eq.s32.totalorder %s22, 0
      %p43 = por %p41, %p42
      %p44 = scmp.ne.s32.totalorder %s30, %s31
      %p45 = scmp.eq.s32.totalorder %s23, 1
      %p46 = por %p44, %p45
      %p48 = scmp.ne.s32.totalorder %s31, %s47
      %p49 = scmp.eq.s32.totalorder %s23, 0
      %p50 = por %p48, %p49
      %s52 = sadd.s32 %s51, 1
      %p55 = scmp.eq.s32.totalorder %s17, 1
      %p56 = scmp.ne.s32.totalorder %s51, %s53
      %p57 = scmp.eq.s32.totalorder %s17, 0
      %p58 = por %p56, %p57
      %p59 = scmp.ne.s32.totalorder %s51, %s53
      %p60 = scmp.eq.s32.totalorder %s22, 1
      %p61 = por %p59, %p60
      %p62 = scmp.ne.s32.totalorder %s53, %s54
      %p63 = scmp.eq.s32.totalorder %s22, 0
      %p64 = por %p62, %p63
      %p65 = scmp.ne.s32.totalorder %s53, %s54
      %p66 = scmp.eq.s32.totalorder %s23, 1
      %p67 = por %p65, %p66
      %p69 = scmp.ne.s32.totalorder %s54, %s68
      %p70 = scmp.eq.s32.totalorder %s23, 0
      %p71 = por %p69, %p70
      %s73 = sadd.s32 %s72, 1
      %p76 = scmp.eq.s32.totalorder %s17, 1
      %p77 = scmp.ne.s32.totalorder %s72, %s74
      %p78 = scmp.eq.s32.totalorder %s17, 0
      %p79 = por %p77, %p78
      %p80 = scmp.ne.s32.totalorder %s72, %s74
      %p81 = scmp.eq.s32.totalorder %s22, 1
      %p82 = por %p80, %p81
      %p83 = scmp.ne.s32.totalorder %s74, %s75
      %p84 = scmp.eq.s32.totalorder %s22, 0
      %p85 = por %p83, %p84
      %p86 = scmp.ne.s32.totalorder %s74, %s75
      %p87 = scmp.eq.s32.totalorder %s23, 1
      %p88 = por %p86, %p87
      %p90 = scmp.ne.s32.totalorder %s75, %s89
      %p91 = scmp.eq.s32.totalorder %s23, 0
      %p92 = por %p90, %p91
      %s94 = sadd.s32 %s93, 1
      %p97 = scmp.eq.s32.totalorder %s17, 1
      %p98 = scmp.ne.s32.totalorder %s93, %s95
      %p99 = scmp.eq.s32.totalorder %s17, 0
      %p100 = por %p98, %p99
      %p101 = scmp.ne.s32.totalorder %s93, %s95
      %p102 = scmp.eq.s32.totalorder %s22, 1
      %p103 = por %p101, %p102
      %p104 = scmp.ne.s32.totalorder %s95, %s96
      %p105 = scmp.eq.s32.totalorder %s22, 0
      %p106 = por %p104, %p105
      %p107 = scmp.ne.s32.totalorder %s95, %s96
      %p108 = scmp.eq.s32.totalorder %s23, 1
      %p109 = por %p107, %p108
      %p111 = scmp.ne.s32.totalorder %s96, %s110
      %p112 = scmp.eq.s32.totalorder %s23, 0
      %p113 = por %p111, %p112
      %s115 = sadd.s32 %s114, 1
      %p118 = scmp.eq.s32.totalorder %s17, 1
      %p119 = scmp.ne.s32.totalorder %s114, %s116
      %p120 = scmp.eq.s32.totalorder %s17, 0
      %p121 = por %p119, %p120
      %p122 = scmp.ne.s32.totalorder %s114, %s116
      %p123 = scmp.eq.s32.totalorder %s22, 1
      %p124 = por %p122, %p123
      %p125 = scmp.ne.s32.totalorder %s116, %s117
      %p126 = scmp.eq.s32.totalorder %s22, 0
      %p127 = por %p125, %p126
      %p128 = scmp.ne.s32.totalorder %s116, %s117
      %p129 = scmp.eq.s32.totalorder %s23, 1
      %p130 = por %p128, %p129
      %p132 = scmp.ne.s32.totalorder %s117, %s131
      %p133 = scmp.eq.s32.totalorder %s23, 0
      %p134 = por %p132, %p133
      %s136 = sadd.s32 %s135, 1
      %p139 = scmp.eq.s32.totalorder %s17, 1
      %p140 = scmp.ne.s32.totalorder %s135, %s137
      %p141 = scmp.eq.s32.totalorder %s17, 0
      %p142 = por %p140, %p141
      %p143 = scmp.ne.s32.totalorder %s135, %s137
      %p144 = scmp.eq.s32.totalorder %s22, 1
      %p145 = por %p143, %p144
      %p146 = scmp.ne.s32.totalorder %s137, %s138
      %p147 = scmp.eq.s32.totalorder %s22, 0
      %p148 = por %p146, %p147
      %p149 = scmp.ne.s32.totalorder %s137, %s138
      %p150 = scmp.eq.s32.totalorder %s23, 1
      %p151 = por %p149, %p150
      %p153 = scmp.ne.s32.totalorder %s138, %s152
      %p154 = scmp.eq.s32.totalorder %s23, 0
      %p155 = por %p153, %p154
      %s157 = sadd.s32 %s156, 1
      %p160 = scmp.eq.s32.totalorder %s17, 1
      %p161 = scmp.ne.s32.totalorder %s156, %s158
      %p162 = scmp.eq.s32.totalorder %s17, 0
      %p163 = por %p161, %p162
      %p164 = scmp.ne.s32.totalorder %s156, %s158
      %p165 = scmp.eq.s32.totalorder %s22, 1
      %p166 = por %p164, %p165
      %p167 = scmp.ne.s32.totalorder %s158, %s159
      %p168 = scmp.eq.s32.totalorder %s22, 0
      %p169 = por %p167, %p168
      %p170 = scmp.ne.s32.totalorder %s158, %s159
      %p171 = scmp.eq.s32.totalorder %s23, 1
      %p172 = por %p170, %p171
      %p174 = scmp.ne.s32.totalorder %s159, %s173
      %p175 = scmp.eq.s32.totalorder %s23, 0
      %p176 = por %p174, %p175
      %s178 = sadd.s32 %s177, 1
      %p181 = scmp.eq.s32.totalorder %s17, 1
      %p182 = scmp.ne.s32.totalorder %s177, %s179
      %p183 = scmp.eq.s32.totalorder %s17, 0
      %p184 = por %p182, %p183
      %p185 = scmp.ne.s32.totalorder %s177, %s179
      %p186 = scmp.eq.s32.totalorder %s22, 1
      %p187 = por %p185, %p186
      %p188 = scmp.ne.s32.totalorder %s179, %s180
      %p189 = scmp.eq.s32.totalorder %s22, 0
      %p190 = por %p188, %p189
      %p191 = scmp.ne.s32.totalorder %s179, %s180
      %p192 = scmp.eq.s32.totalorder %s23, 1
      %p193 = por %p191, %p192
      %p195 = scmp.ne.s32.totalorder %s180, %s194
      %p196 = scmp.eq.s32.totalorder %s23, 0
      %p197 = por %p195, %p196
      %p198 = scmp.le.s32.totalorder 1, %s17
      %p199 = scmp.lt.s32.totalorder %s17, 3
      %p200 = pnand %p198, %p199
      %p201 = pneg %p200
      // Predicated region
      $region9: #{tpu_custom_call.1} parent=5 // pred_check
        _
      $region10: #{tpu_custom_call.1} parent=5 // pred_check_branch
        %203 = sbr.rel (%p200) target = $region12
      $region11: #{tpu_custom_call.1} parent=5 // pred_region
        %s204 = ssub.s32 %s17, 1
        // Predicated region
        $region13: #{tpu_custom_call.1} parent=11 // pred_check
          %p205 = pneg %p64
        $region14: #{tpu_custom_call.1} parent=11 // pred_check_branch
          %207 = sbr.rel (%p205) target = $region16
        $region15: #{tpu_custom_call.1} parent=11 // pred_region
          _
        $region16: #{tpu_custom_call.1} parent=11 // pred_fallthru
          _
        // Predicated region
        $region17: #{tpu_custom_call.1} parent=11 // pred_check
          %p208 = pneg %p85
        $region18: #{tpu_custom_call.1} parent=11 // pred_check_branch
          %210 = sbr.rel (%p208) target = $region20
        $region19: #{tpu_custom_call.1} parent=11 // pred_region
          _
        $region20: #{tpu_custom_call.1} parent=11 // pred_fallthru
          _
        // Predicated region
        $region21: #{tpu_custom_call.1} parent=11 // pred_check
          %p211 = pneg %p106
        $region22: #{tpu_custom_call.1} parent=11 // pred_check_branch
          %213 = sbr.rel (%p211) target = $region24
        $region23: #{tpu_custom_call.1} parent=11 // pred_region
          _
        $region24: #{tpu_custom_call.1} parent=11 // pred_fallthru
          _
        // Predicated region
        $region25: #{tpu_custom_call.1} parent=11 // pred_check
          %p214 = pneg %p127
        $region26: #{tpu_custom_call.1} parent=11 // pred_check_branch
          %216 = sbr.rel (%p214) target = $region28
        $region27: #{tpu_custom_call.1} parent=11 // pred_region
          _
        $region28: #{tpu_custom_call.1} parent=11 // pred_fallthru
          _
        // Predicated region
        $region29: #{tpu_custom_call.1} parent=11 // pred_check
          %p217 = pneg %p148
        $region30: #{tpu_custom_call.1} parent=11 // pred_check_branch
          %219 = sbr.rel (%p217) target = $region32
        $region31: #{tpu_custom_call.1} parent=11 // pred_region
          _
        $region32: #{tpu_custom_call.1} parent=11 // pred_fallthru
          _
        // Predicated region
        $region33: #{tpu_custom_call.1} parent=11 // pred_check
          %p220 = pneg %p169
        $region34: #{tpu_custom_call.1} parent=11 // pred_check_branch
          %222 = sbr.rel (%p220) target = $region36
        $region35: #{tpu_custom_call.1} parent=11 // pred_region
          _
        $region36: #{tpu_custom_call.1} parent=11 // pred_fallthru
          _
      $region12: #{tpu_custom_call.1} parent=5 // pred_fallthru
        _
      %p223 = scmp.lt.s32.totalorder %s17, 2
      // Predicated region
      $region37: #{tpu_custom_call.1} parent=5 // pred_check
        %p224 = pneg %p223
      $region38: #{tpu_custom_call.1} parent=5 // pred_check_branch
        %226 = sbr.rel (%p224) target = $region40
      $region39: #{tpu_custom_call.1} parent=5 // pred_region
        // Predicated region
        $region41: #{tpu_custom_call.1} parent=39 // pred_check
          %p227 = pneg %p37
        $region42: #{tpu_custom_call.1} parent=39 // pred_check_branch
          %229 = sbr.rel (%p227) target = $region44
        $region43: #{tpu_custom_call.1} parent=39 // pred_region
          %s230 = sand.u32 %s27, 1
          %s231 = scalar_lea.sflag [#allocation4], %s230
          %s232 = sand.u32 %s27, 1
          %s233 = smul.addr %s232, 256
          %s234 = scalar_lea.vmem [#allocation3], %s233
          %s235 = smul.u32 8, %s17
          %s237 = ssub.s32 4096, 4096
          %238 = vsyncadd %s231, %s237
          %s239 = smul.addr %s235, 4
          %s240 = smul.addr %s239, 128
          %s241 = scalar_lea.hbm %s0, %s240
          %s242 = sshll.u32 %s234, 4
          %s243 = int_to_ptr.vmem [resolvable:$true] %s242
          %248 = dma.hbm_to_vmem [thread:$0]  %s241, 4096, %s243, %s231, 128, 128, 8
        $region44: #{tpu_custom_call.1} parent=39 // pred_fallthru
          _
      $region40: #{tpu_custom_call.1} parent=5 // pred_fallthru
        _
      %p249 = scmp.le.s32.totalorder 1, %s17
      %p250 = scmp.lt.s32.totalorder %s17, 3
      %p251 = pnand %p249, %p250
      %p252 = pneg %p251
      // Predicated region
      $region45: #{tpu_custom_call.1} parent=5 // pred_check
        _
      $region46: #{tpu_custom_call.1} parent=5 // pred_check_branch
        %254 = sbr.rel (%p251) target = $region48
      $region47: #{tpu_custom_call.1} parent=5 // pred_region
        %s255 = ssub.s32 %s17, 1
        %s256 = sand.u32 %s30, 1
        %s257 = scalar_lea.sflag [#allocation4], %s256
        %s258 = sand.u32 %s30, 1
        %s259 = smul.addr %s258, 256
        %s260 = scalar_lea.vmem [#allocation3], %s259
        // Predicated region
        $region49: #{tpu_custom_call.1} parent=47 // pred_check
          %p261 = pneg %p43
        $region50: #{tpu_custom_call.1} parent=47 // pred_check_branch
          %263 = sbr.rel (%p261) target = $region52
        $region51: #{tpu_custom_call.1} parent=47 // pred_region
          %264 = dma.done %s257, 4096
        $region52: #{tpu_custom_call.1} parent=47 // pred_fallthru
          _
        %s265 = sand.u32 %s30, 1
        %s266 = scalar_lea.sflag [#allocation4], %s265
        %s267 = sand.u32 %s30, 1
        %s268 = smul.addr %s267, 256
        %s269 = scalar_lea.vmem [#allocation3], %s268
        %p270 = pneg %p43
        %p271 = pneg %p40
        %p272 = pneg %p64
        %p273 = pneg %p61
        %p274 = pneg %p85
        %p275 = pneg %p82
        %p276 = pneg %p106
        %p277 = pneg %p103
        %p278 = pneg %p127
        %p279 = pneg %p124
        %p280 = pneg %p148
        %p281 = pneg %p145
        %p282 = pneg %p169
        %p283 = pneg %p166
        %p284 = pneg %p190
        %p285 = pneg %p187
        %s286 = smul.u32 8, %s22
        %v288 = vld [vmem:[%s260] sm:$0xff]
        %v289 = vld [vmem:[%s260 + $0x8] sm:$0xff]
        %v290 = vld [vmem:[%s260 + $0x10] sm:$0xff]
        %v291 = vld [vmem:[%s260 + $0x18] sm:$0xff]
        %v292 = vld [vmem:[%s260 + $0x20] sm:$0xff]
        %v293 = vld [vmem:[%s260 + $0x28] sm:$0xff]
        %v294 = vld [vmem:[%s260 + $0x30] sm:$0xff]
        %v295 = vld [vmem:[%s260 + $0x38] sm:$0xff]
        %v296 = vld [vmem:[%s260 + $0x40] sm:$0xff]
        %v297 = vld [vmem:[%s260 + $0x48] sm:$0xff]
        %v298 = vld [vmem:[%s260 + $0x50] sm:$0xff]
        %v299 = vld [vmem:[%s260 + $0x58] sm:$0xff]
        %v300 = vld [vmem:[%s260 + $0x60] sm:$0xff]
        %v301 = vld [vmem:[%s260 + $0x68] sm:$0xff]
        %v302 = vld [vmem:[%s260 + $0x70] sm:$0xff]
        %v303 = vld [vmem:[%s260 + $0x78] sm:$0xff]
        %v304 = vld [vmem:[%s260 + $0x80] sm:$0xff]
        %v305 = vld [vmem:[%s260 + $0x88] sm:$0xff]
        %v306 = vld [vmem:[%s260 + $0x90] sm:$0xff]
        %v307 = vld [vmem:[%s260 + $0x98] sm:$0xff]
        %v308 = vld [vmem:[%s260 + $0xa0] sm:$0xff]
        %v309 = vld [vmem:[%s260 + $0xa8] sm:$0xff]
        %v310 = vld [vmem:[%s260 + $0xb0] sm:$0xff]
        %v311 = vld [vmem:[%s260 + $0xb8] sm:$0xff]
        %v312 = vld [vmem:[%s260 + $0xc0] sm:$0xff]
        %v313 = vld [vmem:[%s260 + $0xc8] sm:$0xff]
        %v314 = vld [vmem:[%s260 + $0xd0] sm:$0xff]
        %v315 = vld [vmem:[%s260 + $0xd8] sm:$0xff]
        %v316 = vld [vmem:[%s260 + $0xe0] sm:$0xff]
        %v317 = vld [vmem:[%s260 + $0xe8] sm:$0xff]
        %v318 = vld [vmem:[%s260 + $0xf0] sm:$0xff]
        %v319 = vld [vmem:[%s260 + $0xf8] sm:$0xff]
        %vm320 = vcmask 523264
        %v321 = vsel %vm320, %v288, 0.0
        %322 = vadd.xlane.f32.xlu0 %v321
        %v323 = vpop.xlane.xlu0 %322
        %v324 = vsel %vm320, %v289, 0.0
        %325 = vadd.xlane.f32.xlu0 %v324
        %v326 = vpop.xlane.xlu0 %325
        %v327 = vsel %vm320, %v290, 0.0
        %328 = vadd.xlane.f32.xlu0 %v327
        %v329 = vpop.xlane.xlu0 %328
        %v330 = vsel %vm320, %v291, 0.0
        %331 = vadd.xlane.f32.xlu0 %v330
        %v332 = vpop.xlane.xlu0 %331
        %v333 = vsel %vm320, %v292, 0.0
        %334 = vadd.xlane.f32.xlu0 %v333
        %v335 = vpop.xlane.xlu0 %334
        %v336 = vsel %vm320, %v293, 0.0
        %337 = vadd.xlane.f32.xlu0 %v336
        %v338 = vpop.xlane.xlu0 %337
        %v339 = vsel %vm320, %v294, 0.0
        %340 = vadd.xlane.f32.xlu0 %v339
        %v341 = vpop.xlane.xlu0 %340
        %v342 = vsel %vm320, %v295, 0.0
        %343 = vadd.xlane.f32.xlu0 %v342
        %v344 = vpop.xlane.xlu0 %343
        %v345 = vsel %vm320, %v296, 0.0
        %346 = vadd.xlane.f32.xlu0 %v345
        %v347 = vpop.xlane.xlu0 %346
        %v348 = vsel %vm320, %v297, 0.0
        %349 = vadd.xlane.f32.xlu0 %v348
        %v350 = vpop.xlane.xlu0 %349
        %v351 = vsel %vm320, %v298, 0.0
        %352 = vadd.xlane.f32.xlu0 %v351
        %v353 = vpop.xlane.xlu0 %352
        %v354 = vsel %vm320, %v299, 0.0
        %355 = vadd.xlane.f32.xlu0 %v354
        %v356 = vpop.xlane.xlu0 %355
        %v357 = vsel %vm320, %v300, 0.0
        %358 = vadd.xlane.f32.xlu0 %v357
        %v359 = vpop.xlane.xlu0 %358
        %v360 = vsel %vm320, %v301, 0.0
        %361 = vadd.xlane.f32.xlu0 %v360
        %v362 = vpop.xlane.xlu0 %361
        %v363 = vsel %vm320, %v302, 0.0
        %364 = vadd.xlane.f32.xlu0 %v363
        %v365 = vpop.xlane.xlu0 %364
        %v366 = vsel %vm320, %v303, 0.0
        %367 = vadd.xlane.f32.xlu0 %v366
        %v368 = vpop.xlane.xlu0 %367
        %v369 = vsel %vm320, %v304, 0.0
        %370 = vadd.xlane.f32.xlu0 %v369
        %v371 = vpop.xlane.xlu0 %370
        %v372 = vsel %vm320, %v305, 0.0
        %373 = vadd.xlane.f32.xlu0 %v372
        %v374 = vpop.xlane.xlu0 %373
        %v375 = vsel %vm320, %v306, 0.0
        %376 = vadd.xlane.f32.xlu0 %v375
        %v377 = vpop.xlane.xlu0 %376
        %v378 = vsel %vm320, %v307, 0.0
        %379 = vadd.xlane.f32.xlu0 %v378
        %v380 = vpop.xlane.xlu0 %379
        %v381 = vsel %vm320, %v308, 0.0
        %382 = vadd.xlane.f32.xlu0 %v381
        %v383 = vpop.xlane.xlu0 %382
        %v384 = vsel %vm320, %v309, 0.0
        %385 = vadd.xlane.f32.xlu0 %v384
        %v386 = vpop.xlane.xlu0 %385
        %v387 = vsel %vm320, %v310, 0.0
        %388 = vadd.xlane.f32.xlu0 %v387
        %v389 = vpop.xlane.xlu0 %388
        %v390 = vsel %vm320, %v311, 0.0
        %391 = vadd.xlane.f32.xlu0 %v390
        %v392 = vpop.xlane.xlu0 %391
        %v393 = vsel %vm320, %v312, 0.0
        %394 = vadd.xlane.f32.xlu0 %v393
        %v395 = vpop.xlane.xlu0 %394
        %v396 = vsel %vm320, %v313, 0.0
        %397 = vadd.xlane.f32.xlu0 %v396
        %v398 = vpop.xlane.xlu0 %397
        %v399 = vsel %vm320, %v314, 0.0
        %400 = vadd.xlane.f32.xlu0 %v399
        %v401 = vpop.xlane.xlu0 %400
        %v402 = vsel %vm320, %v315, 0.0
        %403 = vadd.xlane.f32.xlu0 %v402
        %v404 = vpop.xlane.xlu0 %403
        %v405 = vsel %vm320, %v316, 0.0
        %406 = vadd.xlane.f32.xlu0 %v405
        %v407 = vpop.xlane.xlu0 %406
        %v408 = vsel %vm320, %v317, 0.0
        %409 = vadd.xlane.f32.xlu0 %v408
        %v410 = vpop.xlane.xlu0 %409
        %v411 = vsel %vm320, %v318, 0.0
        %412 = vadd.xlane.f32.xlu0 %v411
        %v413 = vpop.xlane.xlu0 %412
        %v414 = vsel %vm320, %v319, 0.0
        %415 = vadd.xlane.f32.xlu0 %v414
        %v416 = vpop.xlane.xlu0 %415
        %v417 = vrcp.pop 64.0
        %v418 = vmul.f32 %v323, %v417
        %v419 = vmul.f32 %v326, %v417
        %v420 = vmul.f32 %v329, %v417
        %v421 = vmul.f32 %v332, %v417
        %v422 = vmul.f32 %v335, %v417
        %v423 = vmul.f32 %v338, %v417
        %v424 = vmul.f32 %v341, %v417
        %v425 = vmul.f32 %v344, %v417
        %v426 = vmul.f32 %v347, %v417
        %v427 = vmul.f32 %v350, %v417
        %v428 = vmul.f32 %v353, %v417
        %v429 = vmul.f32 %v356, %v417
        %v430 = vmul.f32 %v359, %v417
        %v431 = vmul.f32 %v362, %v417
        %v432 = vmul.f32 %v365, %v417
        %v433 = vmul.f32 %v368, %v417
        %v434 = vmul.f32 %v371, %v417
        %v435 = vmul.f32 %v374, %v417
        %v436 = vmul.f32 %v377, %v417
        %v437 = vmul.f32 %v380, %v417
        %v438 = vmul.f32 %v383, %v417
        %v439 = vmul.f32 %v386, %v417
        %v440 = vmul.f32 %v389, %v417
        %v441 = vmul.f32 %v392, %v417
        %v442 = vmul.f32 %v395, %v417
        %v443 = vmul.f32 %v398, %v417
        %v444 = vmul.f32 %v401, %v417
        %v445 = vmul.f32 %v404, %v417
        %v446 = vmul.f32 %v407, %v417
        %v447 = vmul.f32 %v410, %v417
        %v448 = vmul.f32 %v413, %v417
        %v449 = vmul.f32 %v416, %v417
        %v450 = vpack.c.bf16 %v419, %v418
        %v451 = vpack.c.bf16 %v421, %v420
        %v452 = vpack.c.bf16 %v423, %v422
        %v453 = vpack.c.bf16 %v425, %v424
        %v454 = vpack.c.bf16 %v427, %v426
        %v455 = vpack.c.bf16 %v429, %v428
        %v456 = vpack.c.bf16 %v431, %v430
        %v457 = vpack.c.bf16 %v433, %v432
        %v458 = vpack.c.bf16 %v435, %v434
        %v459 = vpack.c.bf16 %v437, %v436
        %v460 = vpack.c.bf16 %v439, %v438
        %v461 = vpack.c.bf16 %v441, %v440
        %v462 = vpack.c.bf16 %v443, %v442
        %v463 = vpack.c.bf16 %v445, %v444
        %v464 = vpack.c.bf16 %v447, %v446
        %v465 = vpack.c.bf16 %v449, %v448
        %v466 = vld [vmem:[%s1] sm:$0xff]
        %v467 = vld [vmem:[%s1 + $0x8] sm:$0xff]
        %v468 = vld [vmem:[%s1 + $0x10] sm:$0xff]
        %v469 = vld [vmem:[%s1 + $0x18] sm:$0xff]
        %v470 = vpack.c.bf16 %v467, %v466
        %v471 = vpack.c.bf16 %v469, %v468
        %v488 = vunpack.c.l.b16 %v450
        %v489 = vunpack.c.h.b16 %v450
        %v490 = vunpack.c.l.b16 %v451
        %v491 = vunpack.c.h.b16 %v451
        %v492 = vunpack.c.l.b16 %v452
        %v493 = vunpack.c.h.b16 %v452
        %v494 = vunpack.c.l.b16 %v453
        %v495 = vunpack.c.h.b16 %v453
        %v496 = vunpack.c.l.b16 %v454
        %v497 = vunpack.c.h.b16 %v454
        %v498 = vunpack.c.l.b16 %v455
        %v499 = vunpack.c.h.b16 %v455
        %v500 = vunpack.c.l.b16 %v456
        %v501 = vunpack.c.h.b16 %v456
        %v502 = vunpack.c.l.b16 %v457
        %v503 = vunpack.c.h.b16 %v457
        %v504 = vunpack.c.l.b16 %v458
        %v505 = vunpack.c.h.b16 %v458
        %v506 = vunpack.c.l.b16 %v459
        %v507 = vunpack.c.h.b16 %v459
        %v508 = vunpack.c.l.b16 %v460
        %v509 = vunpack.c.h.b16 %v460
        %v510 = vunpack.c.l.b16 %v461
        %v511 = vunpack.c.h.b16 %v461
        %v512 = vunpack.c.l.b16 %v462
        %v513 = vunpack.c.h.b16 %v462
        %v514 = vunpack.c.l.b16 %v463
        %v515 = vunpack.c.h.b16 %v463
        %v516 = vunpack.c.l.b16 %v464
        %v517 = vunpack.c.h.b16 %v464
        %v518 = vunpack.c.l.b16 %v465
        %v519 = vunpack.c.h.b16 %v465
        %v520 = vlaneseq
        %v521 = vand.u32 %v520, 127
        %v522 = vlaneseq
        %v523 = vshrl.u32 %v522, 7
        %v524 = vsub.s32 %v521, %v523
        %v525 = vrot.slane %v488, %v524
        %v526 = vadd.s32 %v521, 4294967288
        %v527 = vlaneseq
        %v528 = vshrl.u32 %v527, 7
        %v529 = vsub.s32 %v526, %v528
        %v530 = vrot.slane %v489, %v529
        %vm531 = vcmask 130112
        %v532 = vsel %vm531, %v530, %v525
        %v533 = vadd.s32 %v521, 4294967280
        %v534 = vlaneseq
        %v535 = vshrl.u32 %v534, 7
        %v536 = vsub.s32 %v533, %v535
        %v537 = vrot.slane %v490, %v536
        %vm538 = vcmask 195712
        %v539 = vsel %vm538, %v537, %v532
        %v540 = vadd.s32 %v521, 4294967272
        %v541 = vlaneseq
        %v542 = vshrl.u32 %v541, 7
        %v543 = vsub.s32 %v540, %v542
        %v544 = vrot.slane %v491, %v543
        %vm545 = vcmask 261312
        %v546 = vsel %vm545, %v544, %v539
        %v547 = vlaneseq
        %v548 = vshrl.u32 %v547, 7
        %v549 = vsub.s32 %v521, %v548
        %v550 = vrot.slane %v492, %v549
        %v551 = vlaneseq
        %v552 = vshrl.u32 %v551, 7
        %v553 = vsub.s32 %v526, %v552
        %v554 = vrot.slane %v493, %v553
        %v555 = vsel %vm531, %v554, %v550
        %v556 = vlaneseq
        %v557 = vshrl.u32 %v556, 7
        %v558 = vsub.s32 %v533, %v557
        %v559 = vrot.slane %v494, %v558
        %v560 = vsel %vm538, %v559, %v555
        %v561 = vlaneseq
        %v562 = vshrl.u32 %v561, 7
        %v563 = vsub.s32 %v540, %v562
        %v564 = vrot.slane %v495, %v563
        %v565 = vsel %vm545, %v564, %v560
        %v566 = vlaneseq
        %v567 = vshrl.u32 %v566, 7
        %v568 = vsub.s32 %v521, %v567
        %v569 = vrot.slane %v496, %v568
        %v570 = vlaneseq
        %v571 = vshrl.u32 %v570, 7
        %v572 = vsub.s32 %v526, %v571
        %v573 = vrot.slane %v497, %v572
        %v574 = vsel %vm531, %v573, %v569
        %v575 = vlaneseq
        %v576 = vshrl.u32 %v575, 7
        %v577 = vsub.s32 %v533, %v576
        %v578 = vrot.slane %v498, %v577
        %v579 = vsel %vm538, %v578, %v574
        %v580 = vlaneseq
        %v581 = vshrl.u32 %v580, 7
        %v582 = vsub.s32 %v540, %v581
        %v583 = vrot.slane %v499, %v582
        %v584 = vsel %vm545, %v583, %v579
        %v585 = vlaneseq
        %v586 = vshrl.u32 %v585, 7
        %v587 = vsub.s32 %v521, %v586
        %v588 = vrot.slane %v500, %v587
        %v589 = vlaneseq
        %v590 = vshrl.u32 %v589, 7
        %v591 = vsub.s32 %v526, %v590
        %v592 = vrot.slane %v501, %v591
        %v593 = vsel %vm531, %v592, %v588
        %v594 = vlaneseq
        %v595 = vshrl.u32 %v594, 7
        %v596 = vsub.s32 %v533, %v595
        %v597 = vrot.slane %v502, %v596
        %v598 = vsel %vm538, %v597, %v593
        %v599 = vlaneseq
        %v600 = vshrl.u32 %v599, 7
        %v601 = vsub.s32 %v540, %v600
        %v602 = vrot.slane %v503, %v601
        %v603 = vsel %vm545, %v602, %v598
        %v604 = vlaneseq
        %v605 = vshrl.u32 %v604, 7
        %v606 = vsub.s32 %v521, %v605
        %v607 = vrot.slane %v504, %v606
        %v608 = vlaneseq
        %v609 = vshrl.u32 %v608, 7
        %v610 = vsub.s32 %v526, %v609
        %v611 = vrot.slane %v505, %v610
        %v612 = vsel %vm531, %v611, %v607
        %v613 = vlaneseq
        %v614 = vshrl.u32 %v613, 7
        %v615 = vsub.s32 %v533, %v614
        %v616 = vrot.slane %v506, %v615
        %v617 = vsel %vm538, %v616, %v612
        %v618 = vlaneseq
        %v619 = vshrl.u32 %v618, 7
        %v620 = vsub.s32 %v540, %v619
        %v621 = vrot.slane %v507, %v620
        %v622 = vsel %vm545, %v621, %v617
        %v623 = vlaneseq
        %v624 = vshrl.u32 %v623, 7
        %v625 = vsub.s32 %v521, %v624
        %v626 = vrot.slane %v508, %v625
        %v627 = vlaneseq
        %v628 = vshrl.u32 %v627, 7
        %v629 = vsub.s32 %v526, %v628
        %v630 = vrot.slane %v509, %v629
        %v631 = vsel %vm531, %v630, %v626
        %v632 = vlaneseq
        %v633 = vshrl.u32 %v632, 7
        %v634 = vsub.s32 %v533, %v633
        %v635 = vrot.slane %v510, %v634
        %v636 = vsel %vm538, %v635, %v631
        %v637 = vlaneseq
        %v638 = vshrl.u32 %v637, 7
        %v639 = vsub.s32 %v540, %v638
        %v640 = vrot.slane %v511, %v639
        %v641 = vsel %vm545, %v640, %v636
        %v642 = vlaneseq
        %v643 = vshrl.u32 %v642, 7
        %v644 = vsub.s32 %v521, %v643
        %v645 = vrot.slane %v512, %v644
        %v646 = vlaneseq
        %v647 = vshrl.u32 %v646, 7
        %v648 = vsub.s32 %v526, %v647
        %v649 = vrot.slane %v513, %v648
        %v650 = vsel %vm531, %v649, %v645
        %v651 = vlaneseq
        %v652 = vshrl.u32 %v651, 7
        %v653 = vsub.s32 %v533, %v652
        %v654 = vrot.slane %v514, %v653
        %v655 = vsel %vm538, %v654, %v650
        %v656 = vlaneseq
        %v657 = vshrl.u32 %v656, 7
        %v658 = vsub.s32 %v540, %v657
        %v659 = vrot.slane %v515, %v658
        %v660 = vsel %vm545, %v659, %v655
        %v661 = vlaneseq
        %v662 = vshrl.u32 %v661, 7
        %v663 = vsub.s32 %v521, %v662
        %v664 = vrot.slane %v516, %v663
        %v665 = vlaneseq
        %v666 = vshrl.u32 %v665, 7
        %v667 = vsub.s32 %v526, %v666
        %v668 = vrot.slane %v517, %v667
        %v669 = vsel %vm531, %v668, %v664
        %v670 = vlaneseq
        %v671 = vshrl.u32 %v670, 7
        %v672 = vsub.s32 %v533, %v671
        %v673 = vrot.slane %v518, %v672
        %v674 = vsel %vm538, %v673, %v669
        %v675 = vlaneseq
        %v676 = vshrl.u32 %v675, 7
        %v677 = vsub.s32 %v540, %v676
        %v678 = vrot.slane %v519, %v677
        %v679 = vsel %vm545, %v678, %v674
        %vm680 = vcmask 1041409
        %v681 = vsel %vm680, %v565, %v546
        %vm682 = vcmask 1042434
        %v683 = vsel %vm682, %v584, %v681
        %vm684 = vcmask 1043459
        %v685 = vsel %vm684, %v603, %v683
        %vm686 = vcmask 1044484
        %v687 = vsel %vm686, %v622, %v685
        %vm688 = vcmask 1045509
        %v689 = vsel %vm688, %v641, %v687
        %vm690 = vcmask 1046534
        %v691 = vsel %vm690, %v660, %v689
        %vm692 = vcmask 1047559
        %v693 = vsel %vm692, %v679, %v691
        %v694 = vpack.c.b16 %v693, %v693
        %vm695 = vcmask 261120
        %v697 = vsel %vm695, %v694, 0
        %699 = vmatprep.subr.bf16.mxu0 0
        %700 = vmatpush1.bf16.msra.mxu0 %v470
        %701 = vmatprep.subr.bf16.mxu0 0
        %702 = vmatpush1.bf16.msra.mxu0 %v471
        %703 = vmatprep.subr.bf16.mxu0 0
        %704 = vmatpush1.bf16.msra.mxu0 0
        %705 = vmatprep.subr.bf16.mxu0 0
        %706 = vmatpush1.bf16.msra.mxu0 0
        %707 = vmatprep.subr.bf16.mxu0 0
        %708 = vmatpush1.bf16.msra.mxu0 0
        %709 = vmatprep.subr.bf16.mxu0 0
        %710 = vmatpush1.bf16.msra.mxu0 0
        %711 = vmatprep.subr.bf16.mxu0 0
        %712 = vmatpush1.bf16.msra.mxu0 0
        %713 = vmatprep.subr.bf16.mxu0 0
        %714 = vmatpush1.bf16.msra.mxu0 0
        %715 = vmatprep.subr.bf16.mxu0 0
        %716 = vmatpush1.bf16.msra.mxu0 0
        %717 = vmatprep.subr.bf16.mxu0 0
        %718 = vmatpush1.bf16.msra.mxu0 0
        %719 = vmatprep.subr.bf16.mxu0 0
        %720 = vmatpush1.bf16.msra.mxu0 0
        %721 = vmatprep.subr.bf16.mxu0 0
        %722 = vmatpush1.bf16.msra.mxu0 0
        %723 = vmatprep.subr.bf16.mxu0 0
        %724 = vmatpush1.bf16.msra.mxu0 0
        %725 = vmatprep.subr.bf16.mxu0 0
        %726 = vmatpush1.bf16.msra.mxu0 0
        %727 = vmatprep.subr.bf16.mxu0 0
        %728 = vmatpush1.bf16.msra.mxu0 0
        %729 = vmatprep.subr.bf16.mxu0 0
        %730 = vmatpush1.bf16.msra.mxu0 0
        %731 = vmatprep.mubr.bf16.mxu0 0
        %732 = vmatmul.mubr.bf16.gmra.mrb[0].mxu0 %v697
        %v733 = vpop.f32.mrb[0].mxu0
        %v734 = vadd.f32 0.0, %v733
        %v735 = vpop.f32.mrb[0].mxu0
        %v736 = vpop.f32.mrb[0].mxu0
        %v737 = vpop.f32.mrb[0].mxu0
        %738 = vdwg.mxu0
        %s739 = smul.u32 %s22, 8
        %s740 = scalar_lea.vmem [#allocation2], %s739
        %741 = vst.msk [vmem:[%s740] sm:$0xff] %vm695, %v734
        %p742 = scmp.eq.s32.totalorder %s22, 1
        // Predicated region
        $region53: #{tpu_custom_call.1} parent=47 // pred_check
          %p743 = pneg %p742
        $region54: #{tpu_custom_call.1} parent=47 // pred_check_branch
          %745 = sbr.rel (%p743) target = $region56
        $region55: #{tpu_custom_call.1} parent=47 // pred_region
          %v746 = vld [vmem:[#allocation2] sm:$0xff]
          %v747 = vld [vmem:[#allocation2 + $0x8] sm:$0xff]
          %v748 = vsel %vm695, %v746, 0.0
          %v749 = vsel %vm695, %v747, 0.0
          %v750 = vadd.f32 %v748, %v749
          %v751 = vrot.slane %v750, 4
          %v752 = vadd.f32 %v750, %v751
          %v753 = vrot.slane %v752, 2
          %v754 = vadd.f32 %v752, %v753
          %v755 = vrot.slane %v754, 1
          %v756 = vadd.f32 %v754, %v755
          %v757 = vrcp.pop 16.0
          %v758 = vmul.f32 %v756, %v757
          %v759 = vsub.f32 %v746, %v758
          %v760 = vsub.f32 %v747, %v758
          %v761 = vmul.f32 %v759, %v759
          %v762 = vmul.f32 %v760, %v760
          %v763 = vsel %vm695, %v761, 0.0
          %v764 = vsel %vm695, %v762, 0.0
          %v765 = vadd.f32 %v763, %v764
          %v766 = vrot.slane %v765, 4
          %v767 = vadd.f32 %v765, %v766
          %v768 = vrot.slane %v767, 2
          %v769 = vadd.f32 %v767, %v768
          %v770 = vrot.slane %v769, 1
          %v771 = vadd.f32 %v769, %v770
          %v772 = vmul.f32 %v771, %v757
          %v773 = vld [vmem:[%s2] sm:$0x1]
          %v774 = vadd.f32 %v772, 1e-05
          %v775 = vrsqrt.pop %v774
          %v776 = vmul.f32 %v773, %v775
          %v777 = vld [vmem:[%s3] sm:$0x1]
          %v778 = vmul.f32 %v758, %v776
          %v779 = vsub.f32 %v777, %v778
          %v780 = vld [vmem:[#allocation2] ss:$4 sm:$0xf]
          %v782 = vlaneseq
          %v783 = vshrl.u32 %v782, 7
          %v784 = vsub.s32 0, %v783
          %v785 = vrot.slane %v776, %v784
          %v787 = vmul.f32 %v780, %v785
          %v789 = vlaneseq
          %v790 = vshrl.u32 %v789, 7
          %v791 = vsub.s32 0, %v790
          %v792 = vrot.slane %v779, %v791
          %v794 = vadd.f32 %v787, %v792
          %vm795 = vcmp.ge.f32.partialorder %v794, 0.0
          %v796 = vmul.f32 %v794, 0.01
          %v797 = vsel %vm795, %v794, %v796
          %v798 = vld [vmem:[%s4] sm:$0xff]
          %v799 = vld [vmem:[%s4 + $0x8] sm:$0xff]
          %v800 = vld [vmem:[%s4 + $0x10] sm:$0xff]
          %v801 = vld [vmem:[%s4 + $0x18] sm:$0xff]
          %v802 = vpack.c.bf16 %v797, %v797
          %v803 = vpack.c.bf16 %v799, %v798
          %v804 = vpack.c.bf16 %v801, %v800
          %s805 = scalar_lea.vmem [#allocation2], 1
          %v806 = vld [vmem:[%s805] ss:$4 sm:$0xf]
          %v807 = vmul.f32 %v806, %v785
          %v808 = vadd.f32 %v807, %v792
          %vm809 = vcmp.ge.f32.partialorder %v808, 0.0
          %v810 = vmul.f32 %v808, 0.01
          %v811 = vsel %vm809, %v808, %v810
          %v812 = vld [vmem:[%s4 + $0x20] sm:$0xff]
          %v813 = vld [vmem:[%s4 + $0x28] sm:$0xff]
          %v814 = vld [vmem:[%s4 + $0x30] sm:$0xff]
          %v815 = vld [vmem:[%s4 + $0x38] sm:$0xff]
          %v816 = vpack.c.bf16 %v811, %v811
          %v817 = vpack.c.bf16 %v813, %v812
          %v818 = vpack.c.bf16 %v815, %v814
          %v820 = vsel %vm695, %v816, 0
          %822 = vmatprep.subr.bf16.mxu0 0
          %823 = vmatpush1.bf16.msra.mxu0 %v817
          %824 = vmatprep.subr.bf16.mxu0 0
          %825 = vmatpush1.bf16.msra.mxu0 %v818
          %826 = vmatprep.subr.bf16.mxu0 0
          %827 = vmatpush1.bf16.msra.mxu0 0
          %828 = vmatprep.subr.bf16.mxu0 0
          %829 = vmatpush1.bf16.msra.mxu0 0
          %830 = vmatprep.subr.bf16.mxu0 0
          %831 = vmatpush1.bf16.msra.mxu0 0
          %832 = vmatprep.subr.bf16.mxu0 0
          %833 = vmatpush1.bf16.msra.mxu0 0
          %834 = vmatprep.subr.bf16.mxu0 0
          %835 = vmatpush1.bf16.msra.mxu0 0
          %836 = vmatprep.subr.bf16.mxu0 0
          %837 = vmatpush1.bf16.msra.mxu0 0
          %838 = vmatprep.subr.bf16.mxu0 0
          %839 = vmatpush1.bf16.msra.mxu0 0
          %840 = vmatprep.subr.bf16.mxu0 0
          %841 = vmatpush1.bf16.msra.mxu0 0
          %842 = vmatprep.subr.bf16.mxu0 0
          %843 = vmatpush1.bf16.msra.mxu0 0
          %844 = vmatprep.subr.bf16.mxu0 0
          %845 = vmatpush1.bf16.msra.mxu0 0
          %846 = vmatprep.subr.bf16.mxu0 0
          %847 = vmatpush1.bf16.msra.mxu0 0
          %848 = vmatprep.subr.bf16.mxu0 0
          %849 = vmatpush1.bf16.msra.mxu0 0
          %850 = vmatprep.subr.bf16.mxu0 0
          %851 = vmatpush1.bf16.msra.mxu0 0
          %852 = vmatprep.subr.bf16.mxu0 0
          %853 = vmatpush1.bf16.msra.mxu0 0
          %854 = vmatprep.mubr.bf16.mxu0 0
          %855 = vmatmul.mubr.bf16.gmra.mrb[0].mxu0 %v820
          %v856 = vpop.f32.mrb[0].mxu0
          %v857 = vadd.f32 0.0, %v856
          %v858 = vpop.f32.mrb[0].mxu0
          %v859 = vpop.f32.mrb[0].mxu0
          %v860 = vpop.f32.mrb[0].mxu0
          %861 = vdwg.mxu0
          %v863 = vsel %vm695, %v802, 0
          %865 = vmatprep.subr.bf16.mxu0 0
          %866 = vmatpush1.bf16.msra.mxu0 %v803
          %867 = vmatprep.subr.bf16.mxu0 0
          %868 = vmatpush1.bf16.msra.mxu0 %v804
          %869 = vmatprep.subr.bf16.mxu0 0
          %870 = vmatpush1.bf16.msra.mxu0 0
          %871 = vmatprep.subr.bf16.mxu0 0
          %872 = vmatpush1.bf16.msra.mxu0 0
          %873 = vmatprep.subr.bf16.mxu0 0
          %874 = vmatpush1.bf16.msra.mxu0 0
          %875 = vmatprep.subr.bf16.mxu0 0
          %876 = vmatpush1.bf16.msra.mxu0 0
          %877 = vmatprep.subr.bf16.mxu0 0
          %878 = vmatpush1.bf16.msra.mxu0 0
          %879 = vmatprep.subr.bf16.mxu0 0
          %880 = vmatpush1.bf16.msra.mxu0 0
          %881 = vmatprep.subr.bf16.mxu0 0
          %882 = vmatpush1.bf16.msra.mxu0 0
          %883 = vmatprep.subr.bf16.mxu0 0
          %884 = vmatpush1.bf16.msra.mxu0 0
          %885 = vmatprep.subr.bf16.mxu0 0
          %886 = vmatpush1.bf16.msra.mxu0 0
          %887 = vmatprep.subr.bf16.mxu0 0
          %888 = vmatpush1.bf16.msra.mxu0 0
          %889 = vmatprep.subr.bf16.mxu0 0
          %890 = vmatpush1.bf16.msra.mxu0 0
          %891 = vmatprep.subr.bf16.mxu0 0
          %892 = vmatpush1.bf16.msra.mxu0 0
          %893 = vmatprep.subr.bf16.mxu0 0
          %894 = vmatpush1.bf16.msra.mxu0 0
          %895 = vmatprep.subr.bf16.mxu0 0
          %896 = vmatpush1.bf16.msra.mxu0 0
          %897 = vmatprep.mubr.bf16.mxu0 0
          %898 = vmatmul.mubr.bf16.gmra.mrb[0].mxu0 %v863
          %v899 = vpop.f32.mrb[0].mxu0
          %v900 = vadd.f32 %v857, %v899
          %v901 = vpop.f32.mrb[0].mxu0
          %v902 = vpop.f32.mrb[0].mxu0
          %v903 = vpop.f32.mrb[0].mxu0
          %904 = vdwg.mxu0
          %s905 = scalar_lea.vmem [#allocation2], 2
          %v906 = vld [vmem:[%s905] ss:$4 sm:$0xf]
          %v907 = vmul.f32 %v906, %v785
          %v908 = vadd.f32 %v907, %v792
          %vm909 = vcmp.ge.f32.partialorder %v908, 0.0
          %v910 = vmul.f32 %v908, 0.01
          %v911 = vsel %vm909, %v908, %v910
          %v912 = vld [vmem:[%s4 + $0x40] sm:$0xff]
          %v913 = vld [vmem:[%s4 + $0x48] sm:$0xff]
          %v914 = vld [vmem:[%s4 + $0x50] sm:$0xff]
          %v915 = vld [vmem:[%s4 + $0x58] sm:$0xff]
          %v916 = vpack.c.bf16 %v911, %v911
          %v917 = vpack.c.bf16 %v913, %v912
          %v918 = vpack.c.bf16 %v915, %v914
          %v920 = vsel %vm695, %v916, 0
          %922 = vmatprep.subr.bf16.mxu0 0
          %923 = vmatpush1.bf16.msra.mxu0 %v917
          %924 = vmatprep.subr.bf16.mxu0 0
          %925 = vmatpush1.bf16.msra.mxu0 %v918
          %926 = vmatprep.subr.bf16.mxu0 0
          %927 = vmatpush1.bf16.msra.mxu0 0
          %928 = vmatprep.subr.bf16.mxu0 0
          %929 = vmatpush1.bf16.msra.mxu0 0
          %930 = vmatprep.subr.bf16.mxu0 0
          %931 = vmatpush1.bf16.msra.mxu0 0
          %932 = vmatprep.subr.bf16.mxu0 0
          %933 = vmatpush1.bf16.msra.mxu0 0
          %934 = vmatprep.subr.bf16.mxu0 0
          %935 = vmatpush1.bf16.msra.mxu0 0
          %936 = vmatprep.subr.bf16.mxu0 0
          %937 = vmatpush1.bf16.msra.mxu0 0
          %938 = vmatprep.subr.bf16.mxu0 0
          %939 = vmatpush1.bf16.msra.mxu0 0
          %940 = vmatprep.subr.bf16.mxu0 0
          %941 = vmatpush1.bf16.msra.mxu0 0
          %942 = vmatprep.subr.bf16.mxu0 0
          %943 = vmatpush1.bf16.msra.mxu0 0
          %944 = vmatprep.subr.bf16.mxu0 0
          %945 = vmatpush1.bf16.msra.mxu0 0
          %946 = vmatprep.subr.bf16.mxu0 0
          %947 = vmatpush1.bf16.msra.mxu0 0
          %948 = vmatprep.subr.bf16.mxu0 0
          %949 = vmatpush1.bf16.msra.mxu0 0
          %950 = vmatprep.subr.bf16.mxu0 0
          %951 = vmatpush1.bf16.msra.mxu0 0
          %952 = vmatprep.subr.bf16.mxu0 0
          %953 = vmatpush1.bf16.msra.mxu0 0
          %954 = vmatprep.mubr.bf16.mxu0 0
          %955 = vmatmul.mubr.bf16.gmra.mrb[0].mxu0 %v920
          %v956 = vpop.f32.mrb[0].mxu0
          %v957 = vadd.f32 0.0, %v956
          %v958 = vpop.f32.mrb[0].mxu0
          %v959 = vpop.f32.mrb[0].mxu0
          %v960 = vpop.f32.mrb[0].mxu0
          %961 = vdwg.mxu0
          %v962 = vadd.f32 %v900, %v957
          %s963 = scalar_lea.vmem [#allocation2], 3
          %v964 = vld [vmem:[%s963] ss:$4 sm:$0xf]
          %v965 = vmul.f32 %v964, %v785
          %v966 = vadd.f32 %v965, %v792
          %vm967 = vcmp.ge.f32.partialorder %v966, 0.0
          %v968 = vmul.f32 %v966, 0.01
          %v969 = vsel %vm967, %v966, %v968
          %v970 = vld [vmem:[%s4 + $0x60] sm:$0xff]
          %v971 = vld [vmem:[%s4 + $0x68] sm:$0xff]
          %v972 = vld [vmem:[%s4 + $0x70] sm:$0xff]
          %v973 = vld [vmem:[%s4 + $0x78] sm:$0xff]
          %v974 = vpack.c.bf16 %v969, %v969
          %v975 = vpack.c.bf16 %v971, %v970
          %v976 = vpack.c.bf16 %v973, %v972
          %v978 = vsel %vm695, %v974, 0
          %980 = vmatprep.subr.bf16.mxu0 0
          %981 = vmatpush1.bf16.msra.mxu0 %v975
          %982 = vmatprep.subr.bf16.mxu0 0
          %983 = vmatpush1.bf16.msra.mxu0 %v976
          %984 = vmatprep.subr.bf16.mxu0 0
          %985 = vmatpush1.bf16.msra.mxu0 0
          %986 = vmatprep.subr.bf16.mxu0 0
          %987 = vmatpush1.bf16.msra.mxu0 0
          %988 = vmatprep.subr.bf16.mxu0 0
          %989 = vmatpush1.bf16.msra.mxu0 0
          %990 = vmatprep.subr.bf16.mxu0 0
          %991 = vmatpush1.bf16.msra.mxu0 0
          %992 = vmatprep.subr.bf16.mxu0 0
          %993 = vmatpush1.bf16.msra.mxu0 0
          %994 = vmatprep.subr.bf16.mxu0 0
          %995 = vmatpush1.bf16.msra.mxu0 0
          %996 = vmatprep.subr.bf16.mxu0 0
          %997 = vmatpush1.bf16.msra.mxu0 0
          %998 = vmatprep.subr.bf16.mxu0 0
          %999 = vmatpush1.bf16.msra.mxu0 0
          %1000 = vmatprep.subr.bf16.mxu0 0
          %1001 = vmatpush1.bf16.msra.mxu0 0
          %1002 = vmatprep.subr.bf16.mxu0 0
          %1003 = vmatpush1.bf16.msra.mxu0 0
          %1004 = vmatprep.subr.bf16.mxu0 0
          %1005 = vmatpush1.bf16.msra.mxu0 0
          %1006 = vmatprep.subr.bf16.mxu0 0
          %1007 = vmatpush1.bf16.msra.mxu0 0
          %1008 = vmatprep.subr.bf16.mxu0 0
          %1009 = vmatpush1.bf16.msra.mxu0 0
          %1010 = vmatprep.subr.bf16.mxu0 0
          %1011 = vmatpush1.bf16.msra.mxu0 0
          %1012 = vmatprep.mubr.bf16.mxu0 0
          %1013 = vmatmul.mubr.bf16.gmra.mrb[0].mxu0 %v978
          %v1014 = vpop.f32.mrb[0].mxu0
          %v1015 = vadd.f32 0.0, %v1014
          %v1016 = vpop.f32.mrb[0].mxu0
          %v1017 = vpop.f32.mrb[0].mxu0
          %v1018 = vpop.f32.mrb[0].mxu0
          %1019 = vdwg.mxu0
          %v1020 = vadd.f32 %v962, %v1015
          %vm1021 = vcmask 257024
          %v1022 = vsel %vm1021, %v1020, 0.0
          %v1023 = vrot.slane %v1022, 4
          %v1024 = vadd.f32 %v1022, %v1023
          %v1025 = vrot.slane %v1024, 2
          %v1026 = vadd.f32 %v1024, %v1025
          %v1027 = vrot.slane %v1026, 1
          %v1028 = vadd.f32 %v1026, %v1027
          %v1029 = vrcp.pop 4.0
          %v1030 = vmul.f32 %v1028, %v1029
          %v1031 = vsub.f32 %v1020, %v1030
          %v1032 = vmul.f32 %v1031, %v1031
          %v1033 = vsel %vm1021, %v1032, 0.0
          %v1034 = vrot.slane %v1033, 4
          %v1035 = vadd.f32 %v1033, %v1034
          %v1036 = vrot.slane %v1035, 2
          %v1037 = vadd.f32 %v1035, %v1036
          %v1038 = vrot.slane %v1037, 1
          %v1039 = vadd.f32 %v1037, %v1038
          %v1040 = vmul.f32 %v1039, %v1029
          %v1041 = vld [vmem:[%s5] sm:$0x1]
          %v1042 = vadd.f32 %v1040, 1e-05
          %v1043 = vrsqrt.pop %v1042
          %v1044 = vmul.f32 %v1041, %v1043
          %v1045 = vld [vmem:[%s6] sm:$0x1]
          %v1046 = vmul.f32 %v1030, %v1044
          %v1047 = vsub.f32 %v1045, %v1046
          %v1049 = vlaneseq
          %v1050 = vshrl.u32 %v1049, 7
          %v1051 = vsub.s32 0, %v1050
          %v1052 = vrot.slane %v1044, %v1051
          %v1054 = vmul.f32 %v1020, %v1052
          %v1056 = vlaneseq
          %v1057 = vshrl.u32 %v1056, 7
          %v1058 = vsub.s32 0, %v1057
          %v1059 = vrot.slane %v1047, %v1058
          %v1061 = vadd.f32 %v1054, %v1059
          %vm1062 = vcmp.ge.f32.partialorder %v1061, 0.0
          %v1063 = vmul.f32 %v1061, 0.01
          %v1064 = vsel %vm1062, %v1061, %v1063
          %1065 = vst.msk [vmem:[#allocation6] sm:$0xf] %vm1021, %v1064
        $region56: #{tpu_custom_call.1} parent=47 // pred_fallthru
          _
        // Predicated region
        $region57: #{tpu_custom_call.1} parent=47 // pred_check
          %p1066 = pneg %p187
        $region58: #{tpu_custom_call.1} parent=47 // pred_check_branch
          %1068 = sbr.rel (%p1066) target = $region60
        $region59: #{tpu_custom_call.1} parent=47 // pred_region
          %s1070 = ssub.s32 64, 64
          %1071 = vsyncadd [#allocation5], %s1070
          %s1073 = sshll.u32 [#allocation6], 4
          %s1074 = int_to_ptr.vmem [resolvable:$true] %s1073
          %1076 = dma.vmem_to_hbm [thread:$0]  %s1074, 64, %s7, [#allocation5]
        $region60: #{tpu_custom_call.1} parent=47 // pred_fallthru
          _
        // Predicated region
        $region61: #{tpu_custom_call.1} parent=47 // pred_check
          %p1077 = pneg %p187
        $region62: #{tpu_custom_call.1} parent=47 // pred_check_branch
          %1079 = sbr.rel (%p1077) target = $region64
        $region63: #{tpu_custom_call.1} parent=47 // pred_region
          %1080 = dma.done [#allocation5], 64
        $region64: #{tpu_custom_call.1} parent=47 // pred_fallthru
          _
      $region48: #{tpu_custom_call.1} parent=5 // pred_fallthru
        _
      %p1081 = scmp.le.s32.totalorder 2, %s17
      // Predicated region
      $region65: #{tpu_custom_call.1} parent=5 // pred_check
        %p1082 = pneg %p1081
      $region66: #{tpu_custom_call.1} parent=5 // pred_check_branch
        %1084 = sbr.rel (%p1082) target = $region68
      $region67: #{tpu_custom_call.1} parent=5 // pred_region
        %s1085 = ssub.s32 %s17, 2
      $region68: #{tpu_custom_call.1} parent=5 // pred_fallthru
        _
    $region6: #{tpu_custom_call.1} parent=1 // loop_footer
      %s21 = sadd.s32 1, %s17
    $region7: #{tpu_custom_call.1} parent=1 // loop_footer_branch
      %16 = sbr.rel target = $region3
    $region8: #{tpu_custom_call.1} parent=1 // loop_exit
      _
    %1086 = vsyncpa [#allocation4], 1
    %s1087 = scalar_lea.sflag [#allocation4], 1
    %1088 = vsyncpa %s1087, 1
    %1089 = vsyncpa [#allocation5], 1
    %s1090 = scalar_lea.sflag [#allocation5], 1
    %1091 = vsyncpa %s1090, 1

</llo_original>
